<compile_context>
chip_gen: v7x
topology: tpu7x:2x2x1
jax: 0.10.0
libtpu: 0.0.40
codegen_flags: <defaults>
</compile_context>

<pallas_src>
import functools

import numpy as np
import jax
import jax.numpy as jnp
from jax import lax
from jax.experimental import pallas as pl
from jax.experimental.pallas import tpu as pltpu


# ----------------------------------------------------------------------------
# Kernel 1: classification loss + fused (label, low-uncertainty) mask keys
# ----------------------------------------------------------------------------
def _cla_kernel(logits_ref, target_ref, labels_ref, loss_ref, key_ref, *, eta):
    logits = logits_ref[...]                                  # (N, C+1) f32
    target = target_ref[...]                                  # (N, C+1) f32
    n, c1 = logits.shape

    lmax = jnp.max(logits, axis=1, keepdims=True)
    z = logits - lmax
    lse = jnp.log(jnp.sum(jnp.exp(z), axis=1, keepdims=True)) + lmax   # (N,1)
    logp = logits - lse
    per_row = -jnp.sum(logp * target, axis=1, keepdims=True)           # (N,1)
    loss_ref[...] = jnp.sum(per_row, axis=0, keepdims=True) * (1.0 / n)

    # softmax(logits)[:, -1] = exp(logits[:, -1] - lse)  (static lane slice,
    # no iota / eye / select over the class axis)
    p_last = jnp.exp(logits_ref[:, c1 - 1:c1] - lse)                   # (N,1)
    low = p_last <= eta

    # Mask key: key_i == key_j  <=>  (label_i == label_j) & low_i & low_j,
    # except on the diagonal (handled by the off-diagonal predicate in
    # kernel 2).  Valid labels are >= 0, so -(i+1) never collides.
    rid = lax.broadcasted_iota(jnp.int32, (n, 1), 0)
    key_ref[...] = jnp.where(low, labels_ref[...], -(rid + 1))


# ----------------------------------------------------------------------------
# Kernel 2: tiled contrastive mean-log-prob-pos (online log-softmax accumulation)
# ----------------------------------------------------------------------------
def _contrast_kernel(featr_ref, featcT_ref, keyc_ref, keyr_ref,
                     out_ref, m_scr, l_scr, smadc_scr, sm_scr):
    i = pl.program_id(0)
    j = pl.program_id(1)
    nj = pl.num_programs(1)

    @pl.when(j == 0)
    def _():
        m_scr[...] = jnp.full(m_scr.shape, -jnp.inf, jnp.float32)
        l_scr[...] = jnp.zeros(l_scr.shape, jnp.float32)
        smadc_scr[...] = jnp.zeros(smadc_scr.shape, jnp.float32)
        sm_scr[...] = jnp.zeros(sm_scr.shape, jnp.float32)

    # bf16 (TM, D) x (D, TN) -> f32 (TM, TN) on the MXU.  1/temp was folded into
    # the anchor-side features in the wrapper, so adc == (feat @ feat.T) / temp.
    adc = jnp.dot(featr_ref[...], featcT_ref[...],
                  preferred_element_type=jnp.float32)
    tm, tn = adc.shape

    # Off-diagonal predicate from global row / col ids of this tile.
    row_ids = i * tm + lax.broadcasted_iota(jnp.int32, (tm, 1), 0)
    col_ids = j * tn + lax.broadcasted_iota(jnp.int32, (1, tn), 1)
    offdiag = row_ids != col_ids                                    # (TM, TN)

    # Positive-pair mask: one int32 key compare + off-diagonal.
    mask = jnp.logical_and(keyc_ref[...] == keyr_ref[...], offdiag)

    # Online max / exp-sum (max over the FULL row, exp-sum over off-diagonal only).
    m_prev = m_scr[...]
    m_new = jnp.maximum(m_prev, jnp.max(adc, axis=1, keepdims=True))
    alpha = jnp.exp(m_prev - m_new)                   # 0 at j==0 (m_prev = -inf)
    exp_tile = jnp.where(offdiag, jnp.exp(adc - m_new), 0.0)

    l_scr[...] = alpha * l_scr[...] + jnp.sum(exp_tile, axis=1, keepdims=True)
    smadc_scr[...] = smadc_scr[...] + jnp.sum(jnp.where(mask, adc, 0.0),
                                              axis=1, keepdims=True)
    sm_scr[...] = sm_scr[...] + jnp.sum(jnp.where(mask, 1.0, 0.0),
                                        axis=1, keepdims=True)
    m_scr[...] = m_new

    @pl.when(j == nj - 1)
    def _():
        summask = sm_scr[...]
        log_denom = m_scr[...] + jnp.log(l_scr[...] + 1e-6)  # rowmax + log(sum_exp + eps)
        num = smadc_scr[...] - log_denom * summask
        out_ref[...] = num / (summask + 1e-6)                # mean_log_prob_pos


# ----------------------------------------------------------------------------
# Wrapper
# ----------------------------------------------------------------------------
def _pick_tile(n):
    for t in (256, 128):
        if n % t == 0:
            return t
    return n


def _vmem_limit(tm, tn, d):
    work = 2 * (tm * d + d * tn) * 2          # double-buffered bf16 feature tiles
    work += 2 * (tm + tn) * 4 * 2             # int32 key tiles (double-buffered)
    work += 8 * tm * 4                        # scratch accumulators + output block
    work += 6 * tm * tn * 4                   # f32 (TM,TN) temporaries headroom
    return int(min(64 * 1024 * 1024, max(32 * 1024 * 1024, 2 * work)))


def make_gamma_schedule(n_epoch, warm_up, gamma):
    sched = np.ones(n_epoch, dtype=np.float32)
    # torch.logspace(-warm_up, 0, warm_up, base=e)
    sched[:warm_up] = np.e ** np.linspace(-warm_up, 0, warm_up)
    return sched * gamma


def supcl_loss_pallas(features, logits, labels, index, delta_smooth, epoch, *,
                      temp, base_temp, eta, gamma_sched, c, aug_views):
    bsz, n_views, dim = features.shape
    assert n_views == aug_views
    n = bsz * n_views

    # contrast_feature = cat(unbind(features, dim=1), dim=0) -> view-major [N, D]
    feat = jnp.transpose(features, (1, 0, 2)).reshape(n, dim).astype(jnp.float32)

    db_labels = jnp.tile(labels, aug_views).astype(jnp.int32)       # (N,)

    # one-hot target with label smoothing (glue; scatter stays in JAX)
    delta_rep = jnp.tile(delta_smooth[index], aug_views)            # (N,)
    target_oh = (jax.nn.one_hot(db_labels, c + 1, dtype=jnp.float32)
                 * (1.0 - delta_rep)[:, None])
    target_oh = target_oh.at[:, -1].set(delta_rep)

    # ---- kernel 1: classification loss + fused mask keys ---------------------
    loss_cla, key_col = pl.pallas_call(
        functools.partial(_cla_kernel, eta=float(eta)),
        out_shape=(jax.ShapeDtypeStruct((1, 1), jnp.float32),
                   jax.ShapeDtypeStruct((n, 1), jnp.int32)),
        in_specs=[pl.BlockSpec(memory_space=pltpu.MemorySpace.VMEM)] * 3,
        out_specs=(pl.BlockSpec(memory_space=pltpu.MemorySpace.VMEM),
                   pl.BlockSpec(memory_space=pltpu.MemorySpace.VMEM)),
    )(logits.astype(jnp.float32), target_oh, db_labels.reshape(n, 1))
    key_row = key_col.reshape(1, n)

    # ---- kernel 2: tiled contrastive term -------------------------------------
    tm = _pick_tile(n)
    tn = _pick_tile(n)
    grid = (n // tm, n // tn)

    # 1/temp folded into the anchor side before the bf16 cast; contrast side
    # pre-transposed once so each tile matmul is a canonical (TM,D)x(D,TN).
    feat_anchor = (feat * (1.0 / temp)).astype(jnp.bfloat16)        # (N, D)
    feat_contrT = feat.T.astype(jnp.bfloat16)                       # (D, N)

    mlpp = pl.pallas_call(
        _contrast_kernel,
        out_shape=jax.ShapeDtypeStruct((n, 1), jnp.float32),
        grid_spec=pltpu.PrefetchScalarGridSpec(
            num_scalar_prefetch=0,
            grid=grid,
            in_specs=[
                pl.BlockSpec((tm, dim), lambda i, j: (i, 0)),       # anchor feats (bf16)
                pl.BlockSpec((dim, tn), lambda i, j: (0, j)),       # contrast^T   (bf16)
                pl.BlockSpec((tm, 1), lambda i, j: (i, 0)),         # mask keys (col, int32)
                pl.BlockSpec((1, tn), lambda i, j: (0, j)),         # mask keys (row, int32)
            ],
            out_specs=pl.BlockSpec((tm, 1), lambda i, j: (i, 0)),
            scratch_shapes=[pltpu.VMEM((tm, 1), jnp.float32)] * 4,  # m, l, sum(mask*adc), sum(mask)
        ),
        compiler_params=pltpu.CompilerParams(
            dimension_semantics=("parallel", "arbitrary"),
            vmem_limit_bytes=_vmem_limit(tm, tn, dim),
        ),
    )(feat_anchor, feat_contrT, key_col, key_row)

    loss_cl = jnp.mean(-(temp / base_temp) * mlpp)
    gamma_e = jnp.asarray(gamma_sched, jnp.float32)[epoch]          # traced -> no recompile
    return loss_cla[0, 0] + gamma_e * loss_cl


# ----------------------------------------------------------------------------
# Pure-JAX reference (mirrors the PyTorch forward), for self-check
# ----------------------------------------------------------------------------
def supcl_loss_ref(features, logits, labels, index, delta_smooth, epoch, *,
                   temp, base_temp, eta, gamma_sched, c, aug_views):
    bsz, v, d = features.shape
    n = bsz * v
    delta_rep = jnp.tile(delta_smooth[index], aug_views)
    db_labels = jnp.tile(labels, aug_views)
    target_oh = jax.nn.one_hot(db_labels, c + 1) * (1.0 - delta_rep)[:, None]
    target_oh = target_oh.at[:, -1].set(delta_rep)
    logp = jax.nn.log_softmax(logits, axis=1)
    loss_cla = -jnp.mean(jnp.sum(logp * target_oh, axis=1))

    mask = (labels[:, None] == labels[None, :]).astype(jnp.float32)
    contrast = jnp.transpose(features, (1, 0, 2)).reshape(n, d)
    adc = contrast @ contrast.T / temp
    lg = adc - jnp.max(adc, axis=1, keepdims=True)
    mask = jnp.tile(mask, (v, v))
    logits_mask = 1.0 - jnp.eye(n)
    low = jax.nn.softmax(logits, axis=1)[:, -1] <= eta
    low_mask = (low[:, None] & low[None, :]).astype(jnp.float32)
    mask = mask * low_mask * logits_mask
    exp_l = jnp.exp(lg) * logits_mask
    log_prob = lg - jnp.log(exp_l.sum(1, keepdims=True) + 1e-6)
    mlpp = (mask * log_prob).sum(1) / (mask.sum(1) + 1e-6)
    loss_cl = jnp.mean(-(temp / base_temp) * mlpp)
    return loss_cla + gamma_sched[epoch] * loss_cl


if __name__ == "__main__":
    # Deterministic synthetic "args"
    bsz, n_views, dim = 8, 2, 32
    c = 4                      # args.c -> logits have c+1 classes (extra "unknown")
    aug_views = n_views        # args.aug_views
    temp = 0.1                 # args.temp
    base_temp = 0.07
    eta = 0.9                  # args.eta
    gamma = 1.0                # args.gamma
    n_epoch, warm_up = 10, 3
    epoch = 1
    dataset_size = 64
    n = bsz * aug_views

    key = jax.random.PRNGKey(0)
    k1, k2, k3, k4, k5 = jax.random.split(key, 5)
    features = jax.random.normal(k1, (bsz, n_views, dim), jnp.float32)
    features = features / jnp.linalg.norm(features, axis=-1, keepdims=True)
    logits = jax.random.normal(k2, (n, c + 1), jnp.float32)
    labels = jax.random.randint(k3, (bsz,), 0, c)
    index = jax.random.randint(k4, (bsz,), 0, dataset_size)
    delta_smooth = jax.random.uniform(k5, (dataset_size,), jnp.float32,
                                      minval=0.0, maxval=0.3)
    gamma_sched = make_gamma_schedule(n_epoch, warm_up, gamma)

    loss = supcl_loss_pallas(features, logits, labels, index, delta_smooth, epoch,
                             temp=temp, base_temp=base_temp, eta=eta,
                             gamma_sched=gamma_sched, c=c, aug_views=aug_views)
    jax.block_until_ready(loss)

    ref = supcl_loss_ref(features, logits, labels, index, delta_smooth, epoch,
                         temp=temp, base_temp=base_temp, eta=eta,
                         gamma_sched=gamma_sched, c=c, aug_views=aug_views)
    # bf16 MXU inputs vs. the pure-f32 reference -> slightly looser tolerance
    # than a bitmatch; still far below any real bug.
    assert jnp.allclose(loss, ref, rtol=5e-3, atol=5e-3), (loss, ref)
    print("KERNEL_OK")
</pallas_src>

<mosaic_0001>
module attributes {stable_mosaic.version = 11 : i64} {
  func.func @_cla_kernel(%arg0: memref<16x5xf32, #tpu.memory_space<vmem>>, %arg1: memref<16x5xf32, #tpu.memory_space<vmem>>, %arg2: memref<16x1xi32, #tpu.memory_space<vmem>>, %arg3: memref<1x1xf32, #tpu.memory_space<vmem>>, %arg4: memref<16x1xi32, #tpu.memory_space<vmem>>) attributes {dimension_semantics = [], scalar_prefetch = 0 : i64, scratch_operands = 0 : i64, tpu.core_type = #tpu.core_type<tc>} {
    %c0 = arith.constant 0 : index
    %c0_0 = arith.constant 0 : index
    %0 = vector.load %arg0[%c0, %c0_0] : memref<16x5xf32, #tpu.memory_space<vmem>>, vector<16x5xf32>
    %c0_1 = arith.constant 0 : index
    %c0_2 = arith.constant 0 : index
    %1 = vector.load %arg1[%c0_1, %c0_2] : memref<16x5xf32, #tpu.memory_space<vmem>>, vector<16x5xf32>
    %cst = arith.constant dense<0xFF800000> : vector<16xf32>
    %2 = vector.multi_reduction <maximumf>, %0, %cst [1] : vector<16x5xf32> to vector<16xf32>
    %3 = vector.shape_cast %2 : vector<16xf32> to vector<16x1xf32>
    %4 = vector.broadcast %3 : vector<16x1xf32> to vector<16x5xf32>
    %5 = arith.subf %0, %4 : vector<16x5xf32>
    %6 = math.exp %5 : vector<16x5xf32>
    %cst_3 = arith.constant dense<0.000000e+00> : vector<16xf32>
    %7 = vector.multi_reduction <add>, %6, %cst_3 [1] : vector<16x5xf32> to vector<16xf32>
    %8 = vector.shape_cast %7 : vector<16xf32> to vector<16x1xf32>
    %9 = math.log %8 : vector<16x1xf32>
    %10 = arith.addf %9, %3 : vector<16x1xf32>
    %11 = vector.broadcast %10 : vector<16x1xf32> to vector<16x5xf32>
    %12 = arith.subf %0, %11 : vector<16x5xf32>
    %13 = arith.mulf %12, %1 : vector<16x5xf32>
    %cst_4 = arith.constant dense<0.000000e+00> : vector<16xf32>
    %14 = vector.multi_reduction <add>, %13, %cst_4 [1] : vector<16x5xf32> to vector<16xf32>
    %15 = vector.shape_cast %14 : vector<16xf32> to vector<16x1xf32>
    %cst_5 = arith.constant 0.000000e+00 : f32
    %16 = vector.broadcast %cst_5 : f32 to vector<16x1xf32>
    %17 = arith.subf %16, %15 : vector<16x1xf32>
    %cst_6 = arith.constant dense<0.000000e+00> : vector<1xf32>
    %18 = vector.multi_reduction <add>, %17, %cst_6 [0] : vector<16x1xf32> to vector<1xf32>
    %19 = vector.shape_cast %18 : vector<1xf32> to vector<1x1xf32>
    %cst_7 = arith.constant 6.250000e-02 : f32
    %20 = vector.broadcast %cst_7 : f32 to vector<1x1xf32>
    %21 = arith.mulf %19, %20 : vector<1x1xf32>
    %c0_8 = arith.constant 0 : index
    %c0_9 = arith.constant 0 : index
    %22 = vector.load %arg3[%c0_8, %c0_9] : memref<1x1xf32, #tpu.memory_space<vmem>>, vector<1x1xf32>
    tpu.vector_store %arg3[%c0_8, %c0_9], %21 {strides = array<i32>} : memref<1x1xf32, #tpu.memory_space<vmem>>, vector<1x1xf32>,
    %c0_10 = arith.constant 0 : index
    %c4 = arith.constant 4 : index
    %23 = vector.load %arg0[%c0_10, %c4] : memref<16x5xf32, #tpu.memory_space<vmem>>, vector<16x1xf32>
    %24 = arith.subf %23, %10 : vector<16x1xf32>
    %25 = math.exp %24 : vector<16x1xf32>
    %cst_11 = arith.constant 0.899999976 : f32
    %26 = vector.broadcast %cst_11 : f32 to vector<16x1xf32>
    %27 = arith.cmpf ole, %25, %26 : vector<16x1xf32>
    %28 = tpu.iota {dimensions = array<i32: 0>} : vector<16x1xi32>
    %c0_12 = arith.constant 0 : index
    %c0_13 = arith.constant 0 : index
    %29 = vector.load %arg2[%c0_12, %c0_13] : memref<16x1xi32, #tpu.memory_space<vmem>>, vector<16x1xi32>
    %c1_i32 = arith.constant 1 : i32
    %30 = vector.broadcast %c1_i32 : i32 to vector<16x1xi32>
    %31 = arith.addi %28, %30 : vector<16x1xi32>
    %c0_i32 = arith.constant 0 : i32
    %32 = vector.broadcast %c0_i32 : i32 to vector<16x1xi32>
    %33 = arith.subi %32, %31 : vector<16x1xi32>
    %34 = arith.select %27, %29, %33 : vector<16x1xi1>, vector<16x1xi32>
    %c0_14 = arith.constant 0 : index
    %c0_15 = arith.constant 0 : index
    %35 = vector.load %arg4[%c0_14, %c0_15] : memref<16x1xi32, #tpu.memory_space<vmem>>, vector<16x1xi32>
    tpu.vector_store %arg4[%c0_14, %c0_15], %34 {strides = array<i32>} : memref<16x1xi32, #tpu.memory_space<vmem>>, vector<16x1xi32>,
    return
  }
}

</mosaic_0001>

<llo_original>
// kernel: tpu_custom_call.1
$region0: #{tpu_custom_call.1}
  #allocation0 [shape = 'u32[]', space=smem, size = 0x4, offset = 0x4, fixed_abs, tag = 'smem constant byte address 0x4 - core index']
  #allocation1 [shape = 'u32[144,128]{1,0:T(1,128)}', space=vmem, size = 0x12000, scoped, tag = 'internal scratch']
  %s0 = inlined_call_operand.vmem [shape: f32[16,5], index: 0, kind: input, shape index: {}]
  %s1 = inlined_call_operand.vmem [shape: f32[16,5], index: 1, kind: input, shape index: {}]
  %s2 = inlined_call_operand.vmem [shape: s32[16,1], index: 2, kind: input, shape index: {}]
  %s3 = inlined_call_operand.hbm [shape: f32[1,1], index: 3, kind: output, shape index: {0}]
  %s4 = inlined_call_operand.vmem [shape: s32[16,1], index: 4, kind: output, shape index: {1}]
  %5 = xla_tuple %s3, %s4
  %s6 = sld [smem:[#allocation0]]
  $region30: #{tpu_custom_call.1} parent=0
    _
  %s8 = ssub.s32 1, %s6
  %s9 = scalar_select 0, %s8, %s6
  $region1: #{tpu_custom_call.1} parent=0
    #allocation2 [shape = 'u8[512]{0}', space=vmem, size = 0x400, scoped, tag = 'output window, operand 0, single buffered']
    #allocation3 [shape = 's32[1]{0}', space=sflag, size = 0x4, scoped, tag = 'scoped memory for tpu_custom_call.1']
    %10 = vsyncpa [#allocation3], 0
    // Predicated region
    $region2: #{tpu_custom_call.1} parent=1 // pred_check
      _
    $region3: #{tpu_custom_call.1} parent=1 // pred_check_branch
      %12 = sbr.rel (0) target = $region5
    $region4: #{tpu_custom_call.1} parent=1 // pred_region
      _
    $region5: #{tpu_custom_call.1} parent=1 // pred_fallthru
      _
    // Predicated region
    $region6: #{tpu_custom_call.1} parent=1 // pred_check
      _
    $region7: #{tpu_custom_call.1} parent=1 // pred_check_branch
      %14 = sbr.rel (0) target = $region9
    $region8: #{tpu_custom_call.1} parent=1 // pred_region
      _
    $region9: #{tpu_custom_call.1} parent=1 // pred_fallthru
      _
    // Predicated region
    $region10: #{tpu_custom_call.1} parent=1 // pred_check
      _
    $region11: #{tpu_custom_call.1} parent=1 // pred_check_branch
      %16 = sbr.rel (0) target = $region13
    $region12: #{tpu_custom_call.1} parent=1 // pred_region
      _
    $region13: #{tpu_custom_call.1} parent=1 // pred_fallthru
      _
    %v17 = vld [vmem:[%s0] sm:$0xff]
    %v18 = vld [vmem:[%s0 + $0x8] sm:$0xff]
    %v19 = vld [vmem:[%s1] sm:$0xff]
    %v20 = vld [vmem:[%s1 + $0x8] sm:$0xff]
    %vm21 = vcmask 39936
    %v22 = vsel %vm21, %v17, -inf
    %23 = vmax.xlane.f32.xlu0 %v22
    %v24 = vpop.xlane.xlu0 %23
    %v25 = vsel %vm21, %v18, -inf
    %26 = vmax.xlane.f32.xlu0 %v25
    %v27 = vpop.xlane.xlu0 %26
    %v28 = vsub.f32 %v17, %v24
    %v29 = vsub.f32 %v18, %v27
    %v30 = vmul.f32 %v28, 1.442695
    %v31 = vpow.pop %v30
    %v32 = vmul.f32 %v29, 1.442695
    %v33 = vpow.pop %v32
    %v34 = vsel %vm21, %v31, 0.0
    %35 = vadd.xlane.f32.xlu0 %v34
    %v36 = vpop.xlane.xlu0 %35
    %v37 = vsel %vm21, %v33, 0.0
    %38 = vadd.xlane.f32.xlu0 %v37
    %v39 = vpop.xlane.xlu0 %38
    %v40 = vlog2.pop %v36
    %v41 = vmul.f32 %v40, 0.6931472
    %v42 = vlog2.pop %v39
    %v43 = vmul.f32 %v42, 0.6931472
    %v44 = vadd.f32 %v41, %v24
    %v45 = vadd.f32 %v43, %v27
    %v46 = vsub.f32 %v17, %v44
    %v47 = vsub.f32 %v18, %v45
    %v48 = vmul.f32 %v46, %v19
    %v49 = vmul.f32 %v47, %v20
    %v50 = vsel %vm21, %v48, 0.0
    %51 = vadd.xlane.f32.xlu0 %v50
    %v52 = vpop.xlane.xlu0 %51
    %v53 = vsel %vm21, %v49, 0.0
    %54 = vadd.xlane.f32.xlu0 %v53
    %v55 = vpop.xlane.xlu0 %54
    %v56 = vsub.f32 0.0, %v52
    %v57 = vsub.f32 0.0, %v55
    %v58 = vadd.f32 %v56, %v57
    %v59 = vrot.slane %v58, 4
    %v60 = vadd.f32 %v58, %v59
    %v61 = vrot.slane %v60, 2
    %v62 = vadd.f32 %v60, %v61
    %v63 = vrot.slane %v62, 1
    %v64 = vadd.f32 %v62, %v63
    %v65 = vmul.f32 %v64, 0.0625
    %vm66 = vcmask 0
    %67 = vst.msk [vmem:[#allocation2] sm:$0x1] %vm66, %v65
    %v68 = vld [vmem:[%s0] sm:$0xff]
    %v69 = vld [vmem:[%s0 + $0x8] sm:$0xff]
    %v70 = vsub.f32 %v68, %v44
    %v71 = vsub.f32 %v69, %v45
    %v72 = vmul.f32 %v70, 1.442695
    %v73 = vpow.pop %v72
    %v74 = vmul.f32 %v71, 1.442695
    %v75 = vpow.pop %v74
    %vm76 = vcmp.le.f32.partialorder %v73, 0.9
    %vm77 = vcmp.le.f32.partialorder %v75, 0.9
    %v78 = vlaneseq
    %v79 = vshrl.u32 %v78, 7
    %v80 = vadd.s32 %v79, 8
    %v81 = vld [vmem:[%s2] sm:$0xff]
    %v82 = vld [vmem:[%s2 + $0x8] sm:$0xff]
    %v83 = vadd.s32 %v79, 1
    %v84 = vadd.s32 %v80, 1
    %v85 = vsub.s32 0, %v83
    %v86 = vsub.s32 0, %v84
    %87 = vrot.lane.b32.xlu0 %v81, 4
    %v88 = vpop.permute.xlu0 %87
    %89 = vrot.lane.b32.xlu0 %v82, 4
    %v90 = vpop.permute.xlu0 %89
    %v91 = vsel %vm76, %v88, %v85
    %v92 = vsel %vm77, %v90, %v86
    %93 = vrot.lane.b32.xlu0 %v91, 124
    %v94 = vpop.permute.xlu0 %93
    %95 = vrot.lane.b32.xlu0 %v92, 124
    %v96 = vpop.permute.xlu0 %95
    %vm97 = vcmask 7168
    %98 = vst.msk [vmem:[%s4] sm:$0xff] %vm97, %v94
    %99 = vst.msk [vmem:[%s4 + $0x8] sm:$0xff] %vm97, %v96
    // Predicated region
    $region14: #{tpu_custom_call.1} parent=1 // pred_check
      _
    $region15: #{tpu_custom_call.1} parent=1 // pred_check_branch
      %101 = sbr.rel (0) target = $region17
    $region16: #{tpu_custom_call.1} parent=1 // pred_region
      %s103 = ssub.s32 16, 16
      %104 = vsyncadd [#allocation3], %s103
      %s106 = sshll.u32 [#allocation2], 4
      %s107 = int_to_ptr.vmem [resolvable:$true] %s106
      %109 = dma.vmem_to_hbm [thread:$0]  %s107, 16, %s3, [#allocation3]
    $region17: #{tpu_custom_call.1} parent=1 // pred_fallthru
      _
    // Predicated region
    $region18: #{tpu_custom_call.1} parent=1 // pred_check
      _
    $region19: #{tpu_custom_call.1} parent=1 // pred_check_branch
      %111 = sbr.rel (0) target = $region21
    $region20: #{tpu_custom_call.1} parent=1 // pred_region
      _
    $region21: #{tpu_custom_call.1} parent=1 // pred_fallthru
      _
    // Predicated region
    $region22: #{tpu_custom_call.1} parent=1 // pred_check
      _
    $region23: #{tpu_custom_call.1} parent=1 // pred_check_branch
      %113 = sbr.rel (0) target = $region25
    $region24: #{tpu_custom_call.1} parent=1 // pred_region
      %114 = dma.done [#allocation3], 16
    $region25: #{tpu_custom_call.1} parent=1 // pred_fallthru
      _
    // Predicated region
    $region26: #{tpu_custom_call.1} parent=1 // pred_check
      _
    $region27: #{tpu_custom_call.1} parent=1 // pred_check_branch
      %116 = sbr.rel (0) target = $region29
    $region28: #{tpu_custom_call.1} parent=1 // pred_region
      _
    $region29: #{tpu_custom_call.1} parent=1 // pred_fallthru
      _
    %117 = vsyncpa [#allocation3], 1

</llo_original>
